<compile_context>
chip_gen: v7x
topology: tpu7x:2x2x1
jax: 0.10.0
libtpu: 0.0.40
codegen_flags: <defaults>
</compile_context>

<pallas_src>
import jax
import jax.numpy as jnp
from jax.experimental import pallas as pl
from jax.experimental.pallas import tpu as pltpu

LANE = 128


def _linear_kernel(w_ref, b_ref, x_ref, o_ref):
    # w_ref : (F,)        f32 in SMEM   (flattened Linear weight)
    # b_ref : (1,)        f32 in SMEM
    # x_ref : (F, tile_b) in VMEM       (feature-major: batch on lanes)
    # o_ref : (1, tile_b) in VMEM       (lane-dense output slab)
    x = x_ref[...].astype(jnp.float32)            # upcast (bf16 supported)
    acc = x[0:1, :] * w_ref[0]                    # (1, tile_b) VPU fma chain
    for f in range(1, x_ref.shape[0]):            # F == 3, fully unrolled
        acc = acc + x[f:f + 1, :] * w_ref[f]
    o_ref[...] = (acc + b_ref[0]).astype(o_ref.dtype)


def multivariate_linear_regression(
    x,
    weight,
    bias,
    *,
    tile_b=64 * 1024,          # batch rows per grid step (multiple of 128)
    min_pallas_batch=4096,     # below this, plain fused XLA is faster
    x_feature_major=False,     # x already given as (F, B): skip the transpose
    flat_output=False,         # return lane-dense (B,) instead of (B, 1)
):
    """x: (B, F) (or (F, B)), weight: (1, F), bias: (1,) -> (B, 1) (or (B,))."""
    if x_feature_major:
        F, B = x.shape
    else:
        B, F = x.shape
    O, Fw = weight.shape
    if O != 1 or Fw != F:
        raise NotImplementedError("kernel is specialised for nn.Linear(F, 1)")

    out_dtype = jnp.dtype(jnp.result_type(x.dtype, weight.dtype))

    # ---- small-batch fast path: launch/DMA overhead would dominate ----------
    if B < max(min_pallas_batch, LANE):
        xb = x.T if x_feature_major else x               # (B, F)
        y = (xb.astype(out_dtype) @ weight.astype(out_dtype).T
             + bias.astype(out_dtype))                   # (B, 1)
        return y.reshape(B) if flat_output else y

    # ---- Pallas path ---------------------------------------------------------
    x_fm = x if x_feature_major else x.T                 # (F, B) layout plumbing
    w_flat = weight.reshape(F).astype(jnp.float32)       # (F,)  -> SMEM
    b_vec = bias.reshape(O).astype(jnp.float32)          # (1,)  -> SMEM

    # Tile sizing: multiple of 128, capped for VMEM, and >= 2 tiles so the
    # "parallel" grid axis can be sharded across both TensorCores on v7x.
    tile_b = max(LANE, (int(tile_b) // LANE) * LANE)
    tile_b = min(tile_b, 256 * 1024)                     # VMEM ceiling (v7x: 64 MiB phys)
    b_ceil = ((B + LANE - 1) // LANE) * LANE
    half = ((((B + 1) // 2) + LANE - 1) // LANE) * LANE  # round_up(ceil(B/2), 128)
    tile_b = min(tile_b, b_ceil, max(half, LANE))
    num_tiles = pl.cdiv(B, tile_b)

    # Double-buffered, sublane-padded (3->8 in, 1->8 out) blocks: ~128 B/row.
    vmem_need = 128 * tile_b
    vmem_limit = int(min(max(vmem_need + (4 << 20), 32 << 20), 40 << 20))

    bytes_per_row = F * jnp.dtype(x.dtype).itemsize + out_dtype.itemsize
    cost = pl.CostEstimate(flops=2 * F * B, transcendentals=0,
                           bytes_accessed=B * bytes_per_row)

    out = pl.pallas_call(
        _linear_kernel,
        out_shape=jax.ShapeDtypeStruct((1, B), out_dtype),
        grid_spec=pltpu.PrefetchScalarGridSpec(
            num_scalar_prefetch=0,
            grid=(num_tiles,),
            in_specs=[
                pl.BlockSpec(memory_space=pltpu.MemorySpace.SMEM),   # weight (F,)
                pl.BlockSpec(memory_space=pltpu.MemorySpace.SMEM),   # bias   (1,)
                pl.BlockSpec((F, tile_b), lambda i: (0, i)),         # x tile
            ],
            out_specs=pl.BlockSpec((1, tile_b), lambda i: (0, i)),   # y tile
        ),
        compiler_params=pltpu.CompilerParams(
            dimension_semantics=("parallel",),    # batch tiles are independent
            vmem_limit_bytes=vmem_limit,
        ),
        cost_estimate=cost,
    )(w_flat, b_vec, x_fm)

    if flat_output:
        return out.reshape(B)
    return out.reshape(B, O)


if __name__ == "__main__":
    key = jax.random.PRNGKey(0)
    kx, kw, kb, kx2, kx3 = jax.random.split(key, 5)

    F, O = 3, 1
    # Deterministic init mimicking nn.Linear's uniform(-1/sqrt(F), 1/sqrt(F)).
    bound = 1.0 / jnp.sqrt(jnp.float32(F))
    weight = jax.random.uniform(kw, (O, F), jnp.float32, -bound, bound)
    bias = jax.random.uniform(kb, (O,), jnp.float32, -bound, bound)

    # 1) Tiny batch (typical module usage): fast path, no kernel launch.
    x_small = jax.random.normal(kx, (8, F), jnp.float32)
    out_small = jax.block_until_ready(
        multivariate_linear_regression(x_small, weight, bias))
    ref_small = x_small @ weight.T + bias
    assert out_small.shape == (8, O)
    assert jnp.allclose(out_small, ref_small, atol=1e-5), "mismatch (fast path)"

    # 2) Force the Pallas kernel: multi-tile grid with a partial edge block.
    B2 = 301
    x2 = jax.random.normal(kx2, (B2, F), jnp.float32)
    out2 = jax.block_until_ready(
        multivariate_linear_regression(x2, weight, bias,
                                       tile_b=128, min_pallas_batch=1))
    ref2 = x2 @ weight.T + bias
    assert out2.shape == (B2, O)
    assert jnp.allclose(out2, ref2, atol=1e-5), "mismatch (pallas, partial tile)"

    # 3) Default auto tile sizing (>= 2 tiles) on a moderately larger batch.
    B3 = 8 * 1024 + 5
    x3 = jax.random.normal(kx3, (B3, F), jnp.float32)
    out3 = jax.block_until_ready(multivariate_linear_regression(x3, weight, bias))
    ref3 = x3 @ weight.T + bias
    assert out3.shape == (B3, O)
    assert jnp.allclose(out3, ref3, atol=1e-5), "mismatch (pallas, default tiles)"

    # 4) bf16 inputs: kernel upcasts to f32 internally.
    x4 = x2.astype(jnp.bfloat16)
    out4 = jax.block_until_ready(
        multivariate_linear_regression(x4, weight, bias,
                                       tile_b=128, min_pallas_batch=1))
    ref4 = x4.astype(jnp.float32) @ weight.T + bias
    assert out4.dtype == jnp.float32
    assert jnp.allclose(out4, ref4, atol=1e-4), "mismatch (pallas, bf16 input)"

    print("KERNEL_OK")
</pallas_src>

<mosaic_0001>
module attributes {stable_mosaic.version = 11 : i64} {
  func.func @_linear_kernel(%arg0: i32, %arg1: memref<3xf32, #tpu.memory_space<smem>>, %arg2: memref<1xf32, #tpu.memory_space<smem>>, %arg3: memref<3x128xf32, #tpu.memory_space<vmem>>, %arg4: memref<1x128xf32, #tpu.memory_space<vmem>>) attributes {dimension_semantics = [#tpu.dimension_semantics<parallel>], iteration_bounds = array<i64: 3>, scalar_prefetch = 0 : i64, scratch_operands = 0 : i64, tpu.core_type = #tpu.core_type<tc>, window_params = [{transform_indices = @transform_0, window_bounds = array<i64: 3>}, {transform_indices = @transform_1, window_bounds = array<i64: 1>}, {transform_indices = @transform_2, window_bounds = array<i64: 3, 128>}, {transform_indices = @transform_3, window_bounds = array<i64: 1, 128>}]} {
    %c0 = arith.constant 0 : index
    %c0_0 = arith.constant 0 : index
    %0 = vector.load %arg3[%c0, %c0_0] : memref<3x128xf32, #tpu.memory_space<vmem>>, vector<3x128xf32>
    %1 = vector.extract_strided_slice %0 {offsets = [0, 0], sizes = [1, 128], strides = [1, 1]} : vector<3x128xf32> to vector<1x128xf32>
    %c0_1 = arith.constant 0 : index
    %2 = memref.load %arg1[%c0_1] : memref<3xf32, #tpu.memory_space<smem>>
    %3 = vector.broadcast %2 : f32 to vector<1x128xf32>
    %4 = arith.mulf %1, %3 : vector<1x128xf32>
    %5 = vector.extract_strided_slice %0 {offsets = [1, 0], sizes = [1, 128], strides = [1, 1]} : vector<3x128xf32> to vector<1x128xf32>
    %c1 = arith.constant 1 : index
    %6 = memref.load %arg1[%c1] : memref<3xf32, #tpu.memory_space<smem>>
    %7 = vector.broadcast %6 : f32 to vector<1x128xf32>
    %8 = arith.mulf %5, %7 : vector<1x128xf32>
    %9 = arith.addf %4, %8 : vector<1x128xf32>
    %10 = vector.extract_strided_slice %0 {offsets = [2, 0], sizes = [1, 128], strides = [1, 1]} : vector<3x128xf32> to vector<1x128xf32>
    %c2 = arith.constant 2 : index
    %11 = memref.load %arg1[%c2] : memref<3xf32, #tpu.memory_space<smem>>
    %12 = vector.broadcast %11 : f32 to vector<1x128xf32>
    %13 = arith.mulf %10, %12 : vector<1x128xf32>
    %14 = arith.addf %9, %13 : vector<1x128xf32>
    %c0_2 = arith.constant 0 : index
    %15 = memref.load %arg2[%c0_2] : memref<1xf32, #tpu.memory_space<smem>>
    %16 = vector.broadcast %15 : f32 to vector<1x128xf32>
    %17 = arith.addf %14, %16 : vector<1x128xf32>
    %c0_3 = arith.constant 0 : index
    %c0_4 = arith.constant 0 : index
    %18 = vector.load %arg4[%c0_3, %c0_4] : memref<1x128xf32, #tpu.memory_space<vmem>>, vector<1x128xf32>
    tpu.vector_store %arg4[%c0_3, %c0_4], %17 {strides = array<i32>} : memref<1x128xf32, #tpu.memory_space<vmem>>, vector<1x128xf32>,
    return
  }
  func.func @transform_0(%arg0: i32) -> i32 {
    %c0_i32 = arith.constant 0 : i32
    %c0_i32_0 = arith.constant 0 : i32
    return %c0_i32 : i32
  }
  func.func @transform_1(%arg0: i32) -> i32 {
    %c0_i32 = arith.constant 0 : i32
    %c0_i32_0 = arith.constant 0 : i32
    return %c0_i32 : i32
  }
  func.func @transform_2(%arg0: i32) -> (i32, i32) {
    %c0_i32 = arith.constant 0 : i32
    %c0_i32_0 = arith.constant 0 : i32
    return %c0_i32, %arg0 : i32, i32
  }
  func.func @transform_3(%arg0: i32) -> (i32, i32) {
    %c0_i32 = arith.constant 0 : i32
    %c0_i32_0 = arith.constant 0 : i32
    return %c0_i32, %arg0 : i32, i32
  }
}

</mosaic_0001>

<llo_original>
// kernel: tpu_custom_call.1
$region0: #{tpu_custom_call.1}
  #allocation0 [shape = 'u32[]', space=smem, size = 0x4, offset = 0x4, fixed_abs, tag = 'smem constant byte address 0x4 - core index']
  #allocation1 [shape = 'u32[144,128]{1,0:T(1,128)}', space=vmem, size = 0x12000, scoped, tag = 'internal scratch']
  #allocation2 [shape = 'f32[1]{0:T(128)S(6)}', space=smem, size = 0x200, scoped, tag = 'scoped memory for tpu_custom_call.1']
  %s0 = inlined_call_operand.vmem [shape: f32[3], index: 0, kind: input, shape index: {}]
  %s1 = inlined_call_operand.<no memory space> [shape: f32[1], index: 1, kind: input, shape index: {}]
  %s2 = inlined_call_operand.hbm [shape: f32[3,301], index: 2, kind: input, shape index: {}]
  %s3 = inlined_call_operand.hbm [shape: f32[1,301], index: 3, kind: output, shape index: {}]
  %s4 = sld [smem:[#allocation0]]
  $region53: #{tpu_custom_call.1} parent=0
    _
  %s6 = ssub.s32 1, %s4
  %s7 = scalar_select 0, %s6, %s4
  %8 = sst [smem:[#allocation2]] %s1
  $region1: #{tpu_custom_call.1} parent=0
    #allocation3 [shape = 'u8[512]{0}', space=smem, size = 0x200, scoped, tag = 'input window, operand 0, single buffered']
    #allocation4 [shape = 's32[2]{0}', space=sflag, size = 0x8, scoped, tag = 'scoped memory for tpu_custom_call.1']
    #allocation5 [shape = 's32[2]{0}', space=sflag, size = 0x8, scoped, tag = 'scoped memory for tpu_custom_call.1']
    #allocation6 [shape = 's32[2]{0}', space=sflag, size = 0x8, scoped, tag = 'scoped memory for tpu_custom_call.1']
    #allocation7 [shape = 'u8[4096]{0}', space=vmem, size = 0x1000, scoped, tag = 'input window, operand 2']
    #allocation8 [shape = 'u8[1024]{0}', space=vmem, size = 0x400, scoped, tag = 'output window, operand 0']
    %9 = vsyncpa [#allocation6], 0
    %10 = vsyncpa [#allocation4], 0
    %s11 = scalar_lea.sflag [#allocation4], 1
    %12 = vsyncpa %s11, 0
    %13 = vsyncpa [#allocation5], 0
    %s14 = scalar_lea.sflag [#allocation5], 1
    %15 = vsyncpa %s14, 0
    loop: start=0, step=1, limit=5
    $region2: #{tpu_custom_call.1} parent=1 // loop_pre_header
      _
    $region3: #{tpu_custom_call.1} parent=1 // loop_header
      %s17 = sphi 0, %s21
      %p18 = scmp.ge.s32.totalorder %s17, 5
      %s25 = sphi 0, %s25
      %s27 = sphi 0, %s25
      %s28 = sphi 0, %s27
      %s42 = sphi 0, %s28
      %s46 = sphi 0, %s46
      %s48 = sphi 0, %s46
      %s49 = sphi 0, %s48
      %s63 = sphi 0, %s49
      %s69 = sphi 0, %s71
      %s72 = sphi 0, %s69
      %s73 = sphi 0, %s72
      %s89 = sphi 0, %s73
      %s95 = sphi 0, %s97
      %s98 = sphi 0, %s95
      %s99 = sphi 0, %s98
      %s115 = sphi 0, %s99
    $region4: #{tpu_custom_call.1} parent=1 // loop_header_branch
      %20 = sbr.rel (%p18) target = $region8
    $region5: #{tpu_custom_call.1} parent=1 // loop_body
      %s22 = ssub.s32 %s17, 1
      %s23 = ssub.s32 %s17, 2
      %s24 = sadd.s32 %s17, 1
      %s26 = sadd.s32 %s25, 1
      %p29 = scmp.eq.s32.totalorder %s17, 2
      %p30 = scmp.ne.s32.totalorder %s25, %s27
      %p31 = scmp.eq.s32.totalorder %s17, 0
      %p32 = por %p30, %p31
      %p33 = scmp.ne.s32.totalorder %s25, %s27
      %p34 = scmp.eq.s32.totalorder %s22, 2
      %p35 = por %p33, %p34
      %p36 = scmp.ne.s32.totalorder %s27, %s28
      %p37 = scmp.eq.s32.totalorder %s22, 0
      %p38 = por %p36, %p37
      %p39 = scmp.ne.s32.totalorder %s27, %s28
      %p40 = scmp.eq.s32.totalorder %s23, 2
      %p41 = por %p39, %p40
      %p43 = scmp.ne.s32.totalorder %s28, %s42
      %p44 = scmp.eq.s32.totalorder %s23, 0
      %p45 = por %p43, %p44
      %s47 = sadd.s32 %s46, 1
      %p50 = scmp.eq.s32.totalorder %s17, 2
      %p51 = scmp.ne.s32.totalorder %s46, %s48
      %p52 = scmp.eq.s32.totalorder %s17, 0
      %p53 = por %p51, %p52
      %p54 = scmp.ne.s32.totalorder %s46, %s48
      %p55 = scmp.eq.s32.totalorder %s22, 2
      %p56 = por %p54, %p55
      %p57 = scmp.ne.s32.totalorder %s48, %s49
      %p58 = scmp.eq.s32.totalorder %s22, 0
      %p59 = por %p57, %p58
      %p60 = scmp.ne.s32.totalorder %s48, %s49
      %p61 = scmp.eq.s32.totalorder %s23, 2
      %p62 = por %p60, %p61
      %p64 = scmp.ne.s32.totalorder %s49, %s63
      %p65 = scmp.eq.s32.totalorder %s23, 0
      %p66 = por %p64, %p65
      %s67 = ssub.s32 %s17, %s24
      %p68 = scmp.eq.s32.totalorder %s67, 0
      %s70 = sadd.s32 %s69, 1
      %s71 = scalar_select %p68, %s69, %s70
      %p74 = pneg %p68
      %p75 = scmp.eq.s32.totalorder %s17, 2
      %p76 = por %p74, %p75
      %p77 = scmp.ne.s32.totalorder %s69, %s72
      %p78 = scmp.eq.s32.totalorder %s17, 0
      %p79 = por %p77, %p78
      %p80 = scmp.ne.s32.totalorder %s69, %s72
      %p81 = scmp.eq.s32.totalorder %s22, 2
      %p82 = por %p80, %p81
      %p83 = scmp.ne.s32.totalorder %s72, %s73
      %p84 = scmp.eq.s32.totalorder %s22, 0
      %p85 = por %p83, %p84
      %p86 = scmp.ne.s32.totalorder %s72, %s73
      %p87 = scmp.eq.s32.totalorder %s23, 2
      %p88 = por %p86, %p87
      %p90 = scmp.ne.s32.totalorder %s73, %s89
      %p91 = scmp.eq.s32.totalorder %s23, 0
      %p92 = por %p90, %p91
      %s93 = ssub.s32 %s17, %s24
      %p94 = scmp.eq.s32.totalorder %s93, 0
      %s96 = sadd.s32 %s95, 1
      %s97 = scalar_select %p94, %s95, %s96
      %p100 = pneg %p94
      %p101 = scmp.eq.s32.totalorder %s17, 2
      %p102 = por %p100, %p101
      %p103 = scmp.ne.s32.totalorder %s95, %s98
      %p104 = scmp.eq.s32.totalorder %s17, 0
      %p105 = por %p103, %p104
      %p106 = scmp.ne.s32.totalorder %s95, %s98
      %p107 = scmp.eq.s32.totalorder %s22, 2
      %p108 = por %p106, %p107
      %p109 = scmp.ne.s32.totalorder %s98, %s99
      %p110 = scmp.eq.s32.totalorder %s22, 0
      %p111 = por %p109, %p110
      %p112 = scmp.ne.s32.totalorder %s98, %s99
      %p113 = scmp.eq.s32.totalorder %s23, 2
      %p114 = por %p112, %p113
      %p116 = scmp.ne.s32.totalorder %s99, %s115
      %p117 = scmp.eq.s32.totalorder %s23, 0
      %p118 = por %p116, %p117
      %p119 = scmp.le.s32.totalorder 1, %s17
      %p120 = scmp.lt.s32.totalorder %s17, 4
      %p121 = pnand %p119, %p120
      %p122 = pneg %p121
      // Predicated region
      $region9: #{tpu_custom_call.1} parent=5 // pred_check
        _
      $region10: #{tpu_custom_call.1} parent=5 // pred_check_branch
        %124 = sbr.rel (%p121) target = $region12
      $region11: #{tpu_custom_call.1} parent=5 // pred_region
        %s125 = ssub.s32 %s17, 1
        // Predicated region
        $region13: #{tpu_custom_call.1} parent=11 // pred_check
          %p126 = pneg %p38
        $region14: #{tpu_custom_call.1} parent=11 // pred_check_branch
          %128 = sbr.rel (%p126) target = $region16
        $region15: #{tpu_custom_call.1} parent=11 // pred_region
          %s130 = ssub.s32 16, 16
          %131 = vsyncadd [#allocation6], %s130
          %s133 = sshll.u32 %s0, 4
          %s134 = int_to_ptr.vmem [resolvable:$true] %s133
          %136 = dma.vmem_to_smem %s134, 16, [#allocation3], [#allocation6]
        $region16: #{tpu_custom_call.1} parent=11 // pred_fallthru
          _
        // Predicated region
        $region17: #{tpu_custom_call.1} parent=11 // pred_check
          %p137 = pneg %p59
        $region18: #{tpu_custom_call.1} parent=11 // pred_check_branch
          %139 = sbr.rel (%p137) target = $region20
        $region19: #{tpu_custom_call.1} parent=11 // pred_region
          _
        $region20: #{tpu_custom_call.1} parent=11 // pred_fallthru
          _
      $region12: #{tpu_custom_call.1} parent=5 // pred_fallthru
        _
      %p140 = scmp.lt.s32.totalorder %s17, 3
      // Predicated region
      $region21: #{tpu_custom_call.1} parent=5 // pred_check
        %p141 = pneg %p140
      $region22: #{tpu_custom_call.1} parent=5 // pred_check_branch
        %143 = sbr.rel (%p141) target = $region24
      $region23: #{tpu_custom_call.1} parent=5 // pred_region
        // Predicated region
        $region25: #{tpu_custom_call.1} parent=23 // pred_check
          %p144 = pneg %p79
        $region26: #{tpu_custom_call.1} parent=23 // pred_check_branch
          %146 = sbr.rel (%p144) target = $region28
        $region27: #{tpu_custom_call.1} parent=23 // pred_region
          %s147 = sand.u32 %s69, 1
          %s148 = scalar_lea.sflag [#allocation4], %s147
          %s149 = sand.u32 %s69, 1
          %s150 = smul.addr %s149, 4
          %s151 = scalar_lea.vmem [#allocation7], %s150
          %s153 = ssub.s32 64, 64
          %154 = vsyncadd %s148, %s153
          %s155 = smul.addr %s17, 64
          %s156 = scalar_lea.hbm %s2, %s155
          %s158 = sshll.u32 %s151, 4
          %s159 = int_to_ptr.vmem [resolvable:$true] %s158
          %161 = dma.hbm_to_vmem [thread:$0]  %s156, 64, %s159, %s148
        $region28: #{tpu_custom_call.1} parent=23 // pred_fallthru
          _
      $region24: #{tpu_custom_call.1} parent=5 // pred_fallthru
        _
      %p162 = scmp.le.s32.totalorder 1, %s17
      %p163 = scmp.lt.s32.totalorder %s17, 4
      %p164 = pnand %p162, %p163
      %p165 = pneg %p164
      // Predicated region
      $region29: #{tpu_custom_call.1} parent=5 // pred_check
        _
      $region30: #{tpu_custom_call.1} parent=5 // pred_check_branch
        %167 = sbr.rel (%p164) target = $region32
      $region31: #{tpu_custom_call.1} parent=5 // pred_region
        %s168 = ssub.s32 %s17, 1
        // Predicated region
        $region33: #{tpu_custom_call.1} parent=31 // pred_check
          %p169 = pneg %p38
        $region34: #{tpu_custom_call.1} parent=31 // pred_check_branch
          %171 = sbr.rel (%p169) target = $region36
        $region35: #{tpu_custom_call.1} parent=31 // pred_region
          %172 = dma.done [#allocation6], 16
        $region36: #{tpu_custom_call.1} parent=31 // pred_fallthru
          _
        %s173 = sand.u32 %s72, 1
        %s174 = scalar_lea.sflag [#allocation4], %s173
        %s175 = sand.u32 %s72, 1
        %s176 = smul.addr %s175, 4
        %s177 = scalar_lea.vmem [#allocation7], %s176
        // Predicated region
        $region37: #{tpu_custom_call.1} parent=31 // pred_check
          %p178 = pneg %p85
        $region38: #{tpu_custom_call.1} parent=31 // pred_check_branch
          %180 = sbr.rel (%p178) target = $region40
        $region39: #{tpu_custom_call.1} parent=31 // pred_region
          %181 = dma.done %s174, 64
        $region40: #{tpu_custom_call.1} parent=31 // pred_fallthru
          _
        %182 = sfence
        %p183 = pneg %p38
        %p184 = pneg %p35
        %p185 = pneg %p59
        %p186 = pneg %p56
        %s187 = sand.u32 %s72, 1
        %s188 = scalar_lea.sflag [#allocation4], %s187
        %s189 = sand.u32 %s72, 1
        %s190 = smul.addr %s189, 4
        %s191 = scalar_lea.vmem [#allocation7], %s190
        %p192 = pneg %p85
        %p193 = pneg %p82
        %p194 = pneg %p111
        %p195 = pneg %p108
        %s196 = sand.u32 %s98, 1
        %s197 = scalar_lea.sflag [#allocation5], %s196
        %s198 = sand.u32 %s98, 1
        %s199 = scalar_lea.vmem [#allocation8], %s198
        %v200 = vld [vmem:[%s177] sm:$0x7]
        %s201 = sld [smem:[#allocation3]]
        %v202 = vstv %s201
        %v203 = vmul.f32 %v200, %v202
        %s204 = sld [smem:[#allocation3 + $0x1]]
        %v205 = vstv %s204
        %v206 = vmul.f32 %v200, %v205
        %v208 = vrot.slane %v206, 1
        %v210 = vadd.f32 %v203, %v208
        %s211 = sld [smem:[#allocation3 + $0x2]]
        %v212 = vstv %s211
        %v213 = vmul.f32 %v200, %v212
        %v215 = vrot.slane %v213, 2
        %v217 = vadd.f32 %v210, %v215
        %s218 = sld [smem:[#allocation2]]
        %v219 = vstv %s218
        %v220 = vadd.f32 %v217, %v219
        %221 = vst [vmem:[%s199] sm:$0x1] %v220
        %s222 = sand.u32 %s98, 1
        %s223 = scalar_lea.sflag [#allocation5], %s222
        %s224 = sand.u32 %s98, 1
        %s225 = scalar_lea.vmem [#allocation8], %s224
        // Predicated region
        $region41: #{tpu_custom_call.1} parent=31 // pred_check
          %p226 = pneg %p108
        $region42: #{tpu_custom_call.1} parent=31 // pred_check_branch
          %228 = sbr.rel (%p226) target = $region44
        $region43: #{tpu_custom_call.1} parent=31 // pred_region
          %s230 = ssub.s32 16, 16
          %231 = vsyncadd %s223, %s230
          %s232 = smul.addr %s22, 16
          %s233 = scalar_lea.hbm %s3, %s232
          %s235 = sshll.u32 %s225, 4
          %s236 = int_to_ptr.vmem [resolvable:$true] %s235
          %238 = dma.vmem_to_hbm [thread:$0]  %s236, 16, %s233, %s223
        $region44: #{tpu_custom_call.1} parent=31 // pred_fallthru
          _
      $region32: #{tpu_custom_call.1} parent=5 // pred_fallthru
        _
      %p239 = scmp.le.s32.totalorder 2, %s17
      // Predicated region
      $region45: #{tpu_custom_call.1} parent=5 // pred_check
        %p240 = pneg %p239
      $region46: #{tpu_custom_call.1} parent=5 // pred_check_branch
        %242 = sbr.rel (%p240) target = $region48
      $region47: #{tpu_custom_call.1} parent=5 // pred_region
        %s243 = ssub.s32 %s17, 2
        // Predicated region
        $region49: #{tpu_custom_call.1} parent=47 // pred_check
          %p244 = pneg %p114
        $region50: #{tpu_custom_call.1} parent=47 // pred_check_branch
          %246 = sbr.rel (%p244) target = $region52
        $region51: #{tpu_custom_call.1} parent=47 // pred_region
          %s247 = sand.u32 %s99, 1
          %s248 = scalar_lea.sflag [#allocation5], %s247
          %s249 = sand.u32 %s99, 1
          %s250 = scalar_lea.vmem [#allocation8], %s249
          %251 = dma.done %s248, 16
        $region52: #{tpu_custom_call.1} parent=47 // pred_fallthru
          _
      $region48: #{tpu_custom_call.1} parent=5 // pred_fallthru
        _
    $region6: #{tpu_custom_call.1} parent=1 // loop_footer
      %s21 = sadd.s32 1, %s17
    $region7: #{tpu_custom_call.1} parent=1 // loop_footer_branch
      %16 = sbr.rel target = $region3
    $region8: #{tpu_custom_call.1} parent=1 // loop_exit
      _
    %252 = vsyncpa [#allocation4], 1
    %s253 = scalar_lea.sflag [#allocation4], 1
    %254 = vsyncpa %s253, 1
    %255 = vsyncpa [#allocation5], 1
    %s256 = scalar_lea.sflag [#allocation5], 1
    %257 = vsyncpa %s256, 1
    %258 = vsyncpa [#allocation6], 1
    %s259 = scalar_lea.sflag [#allocation6], 1
    %260 = vsyncpa %s259, 1

</llo_original>
